<compile_context>
chip_gen: v5e
topology: v5e:2x2
jax: 0.10.0
libtpu: 0.0.40
codegen_flags: <defaults>
</compile_context>

<pallas_src>
import functools
import math

import jax
import jax.numpy as jnp
from jax.experimental import pallas as pl
from jax.experimental.pallas import tpu as pltpu


def _round_up(n, m):
    return ((n + m - 1) // m) * m


def hamilnet_kernel(x_ref, w1_ref, b1_ref, nha_ref, wv_ref,
                    wlyt_ref, wlzt_ref, bl_ref, out_ref,
                    y_ref, z_ref):
    """Grid = (batch_tile b, layer l).  One HamilBlock per step along l."""
    l = pl.program_id(1)

    @pl.when(l == 0)
    def _init():
        y_ref[...] = x_ref[...].astype(jnp.float32)
        z_ref[...] = jnp.zeros_like(z_ref)

    w1 = w1_ref[...]          # [Hp, Dp]  (weight dtype: f32 or bf16)
    wv = wv_ref[...]          # [Dp, Dp]  pre-scaled by sqrt(h)
    cdt = w1.dtype

    y = y_ref[...]            # f32 accumulators
    # act = relu(y @ W1.T + b1)  -- contract on the D axis of both (no transpose).
    act = jax.lax.dot_general(
        y.astype(cdt), w1, (((1,), (1,)), ((), ())),
        preferred_element_type=jnp.float32) + b1_ref[...]
    act = jnp.maximum(act, 0.0)                               # [TB, Hp]

    # z += h*dz, dz = -(act @ W1) * alpha   (folded: nha = -h*alpha)
    dz = jax.lax.dot_general(
        act.astype(cdt), w1, (((1,), (0,)), ((), ())),
        preferred_element_type=jnp.float32)                   # [TB, Dp]
    z = z_ref[...] + dz * nha_ref[...]
    z_ref[...] = z

    # y += h*dy, dy = (z @ Wv.T) @ Wv   (sqrt(h) folded into Wv twice -> h)
    t = jax.lax.dot_general(
        z.astype(cdt), wv, (((1,), (1,)), ((), ())),
        preferred_element_type=jnp.float32)                   # z @ Wv.T
    y = y + jax.lax.dot_general(
        t.astype(cdt), wv, (((1,), (0,)), ((), ())),
        preferred_element_type=jnp.float32)
    y_ref[...] = y

    @pl.when(l == pl.num_programs(1) - 1)
    def _final():
        pred = (jnp.dot(y, wlyt_ref[...], preferred_element_type=jnp.float32)
                + jnp.dot(z, wlzt_ref[...], preferred_element_type=jnp.float32)
                + bl_ref[...])
        out_ref[...] = pred.astype(out_ref.dtype)


def prepare_params(params, *, num_layers, final_time, weight_dtype=jnp.float32,
                   lane=128):
    """One-time host preprocessing of module weights.

    * pads D, H, out_dim to multiples of 128 with zeros (padding contributes 0)
    * folds -h*alpha into a per-layer vector, sqrt(h) into Wv (so h is baked in)
    * pre-transposes the final linear layer (split for cat(y, z) @ Wl.T)
    * casts the big weights (W1, Wv) to weight_dtype (use bf16 for MXU-native rate)
    """
    w1, b1, alpha, wv, wly, wlz, bl = params
    L, H, D = w1.shape
    out_dim = bl.shape[1]
    h = final_time / num_layers

    Dp = _round_up(D, lane)
    Hp = _round_up(H, lane)
    OutP = _round_up(out_dim, lane)

    def pad(a, shape):
        z = jnp.zeros(shape, jnp.float32)
        return z.at[tuple(slice(0, s) for s in a.shape)].set(a.astype(jnp.float32))

    w1_p = pad(w1, (L, Hp, Dp)).astype(weight_dtype)
    b1_p = pad(b1, (L, 1, Hp))
    nha_p = pad(-h * alpha, (L, 1, Dp))                       # -h * alpha_l
    wv_p = pad(math.sqrt(h) * wv, (L, Dp, Dp)).astype(weight_dtype)
    wlyt_p = pad(wly.T, (Dp, OutP))                           # [D, out] (pre-transposed)
    wlzt_p = pad(wlz.T, (Dp, OutP))
    bl_p = pad(bl, (1, OutP))

    meta = dict(L=L, D=D, H=H, Dp=Dp, Hp=Hp, out_dim=out_dim, OutP=OutP)
    return (w1_p, b1_p, nha_p, wv_p, wlyt_p, wlzt_p, bl_p), meta


def hamilnet_forward(x, prepped, meta, *, tile_b=None, interpret=False):
    w1, b1, nha, wv, wlyt, wlzt, bl = prepped
    L, Dp, Hp, OutP = meta["L"], meta["Dp"], meta["Hp"], meta["OutP"]
    B, D = x.shape
    assert D == meta["D"], (D, meta["D"])

    if tile_b is None:
        # v5e MXU native M tile is 128; use 128 when the batch allows, else round to 8.
        tile_b = 128 if B >= 128 else _round_up(B, 8)
    Bp = _round_up(B, tile_b)
    nb = Bp // tile_b

    x_p = jnp.zeros((Bp, Dp), jnp.float32).at[:B, :D].set(x)

    wbytes = jnp.dtype(w1.dtype).itemsize
    # VMEM budget: double-buffered streamed per-layer weights + resident blocks + scratch.
    streamed = 2 * ((Hp * Dp + Dp * Dp) * wbytes + (Hp + Dp) * 4)
    resident = (2 * tile_b * Dp * 4                 # x block
                + 2 * tile_b * OutP * 4             # out block
                + 2 * (2 * Dp * OutP + OutP) * 4    # wly.T, wlz.T, bl
                + 2 * tile_b * Dp * 4               # y/z scratch
                + tile_b * Hp * 4)                  # act live tile
    vmem_limit = int(min(max(1.25 * (streamed + resident) + (8 << 20), 32 << 20),
                         96 << 20))

    flops = (2 * Bp * L * (2 * Hp * Dp + 2 * Dp * Dp)
             + 2 * Bp * 2 * Dp * OutP)
    bytes_accessed = (L * ((Hp * Dp + Dp * Dp) * wbytes + (Hp + Dp) * 4)
                      + Bp * Dp * 4 + Bp * OutP * 4 + (2 * Dp * OutP + OutP) * 4)

    out = pl.pallas_call(
        hamilnet_kernel,
        out_shape=jax.ShapeDtypeStruct((Bp, OutP), jnp.float32),
        grid=(nb, L),
        in_specs=[
            pl.BlockSpec((tile_b, Dp), lambda b, l: (b, 0)),        # x (resident per b)
            pl.BlockSpec((None, Hp, Dp), lambda b, l: (l, 0, 0)),   # W1_l   (streamed)
            pl.BlockSpec((None, 1, Hp), lambda b, l: (l, 0, 0)),    # b1_l
            pl.BlockSpec((None, 1, Dp), lambda b, l: (l, 0, 0)),    # -h*alpha_l
            pl.BlockSpec((None, Dp, Dp), lambda b, l: (l, 0, 0)),   # sqrt(h)*Wv_l
            pl.BlockSpec((Dp, OutP), lambda b, l: (0, 0)),          # Wl_y.T (resident)
            pl.BlockSpec((Dp, OutP), lambda b, l: (0, 0)),          # Wl_z.T (resident)
            pl.BlockSpec((1, OutP), lambda b, l: (0, 0)),           # bl
        ],
        out_specs=pl.BlockSpec((tile_b, OutP), lambda b, l: (b, 0)),
        scratch_shapes=[pltpu.VMEM((tile_b, Dp), jnp.float32),      # y accumulator
                        pltpu.VMEM((tile_b, Dp), jnp.float32)],     # z accumulator
        compiler_params=pltpu.CompilerParams(
            dimension_semantics=("parallel", "arbitrary"),
            vmem_limit_bytes=vmem_limit),
        cost_estimate=pl.CostEstimate(flops=flops, transcendentals=0,
                                      bytes_accessed=bytes_accessed),
        interpret=interpret,
    )(x_p, w1, b1, nha, wv, wlyt, wlzt, bl)
    return out[:B, :meta["out_dim"]]


def hamilnet_reference(x, params, *, num_layers, final_time=1.0):
    """Plain-JAX reference mirroring the PyTorch forward, for verification."""
    w1, b1, alpha, wv, wly, wlz, bl = params
    h = final_time / num_layers
    y = x
    z = jnp.zeros_like(x)
    for l in range(num_layers):
        act = jnp.maximum(y @ w1[l].T + b1[l], 0.0)
        dz = -(act @ w1[l]) * alpha[l]
        z = z + h * dz
        dy = (z @ wv[l].T) @ wv[l]
        y = y + h * dy
    return y @ wly.T + z @ wlz.T + bl


def init_params(key, *, data_dim, hidden_dim, num_layers, output_dim):
    """Synthetic parameters with the module's shapes.

    Per HamilBlock: mlp[0] = Linear(D, H) -> W1 [H, D], b1 [H]; alpha = ones(D);
                    vts = Linear(D, D, bias=False) -> Wv [D, D].
    HamilNet:       linear_layer = Linear(2D, out) -> Wl [out, 2D], bl [out].
    """
    k = jax.random.split(key, 5)
    s1 = 1.0 / jnp.sqrt(jnp.float32(data_dim))
    w1 = jax.random.uniform(k[0], (num_layers, hidden_dim, data_dim),
                            jnp.float32, -s1, s1)
    b1 = jax.random.uniform(k[1], (num_layers, 1, hidden_dim),
                            jnp.float32, -s1, s1)
    alpha = jnp.ones((num_layers, 1, data_dim), jnp.float32)
    wv = jax.random.uniform(k[2], (num_layers, data_dim, data_dim),
                            jnp.float32, -s1, s1)
    s2 = 1.0 / jnp.sqrt(jnp.float32(2 * data_dim))
    wl = jax.random.uniform(k[3], (output_dim, 2 * data_dim), jnp.float32, -s2, s2)
    bl = jax.random.uniform(k[4], (1, output_dim), jnp.float32, -s2, s2)
    wly, wlz = wl[:, :data_dim], wl[:, data_dim:]
    return (w1, b1, alpha, wv, wly, wlz, bl)


if __name__ == "__main__":
    BATCH, DATA_DIM, HIDDEN_DIM, NUM_LAYERS, OUTPUT_DIM = 2, 4, 32, 3, 1
    FINAL_TIME = 1.0

    key = jax.random.PRNGKey(0)
    kx, kp = jax.random.split(key)
    x = jax.random.normal(kx, (BATCH, DATA_DIM), jnp.float32)
    params = init_params(kp, data_dim=DATA_DIM, hidden_dim=HIDDEN_DIM,
                         num_layers=NUM_LAYERS, output_dim=OUTPUT_DIM)

    # weight_dtype=jnp.bfloat16 for production D/H on v6e/v7x; f32 here for the tight check.
    prepped, meta = prepare_params(params, num_layers=NUM_LAYERS,
                                   final_time=FINAL_TIME,
                                   weight_dtype=jnp.float32)

    pred = hamilnet_forward(x, prepped, meta)
    pred = jax.block_until_ready(pred)

    ref = hamilnet_reference(x, params, num_layers=NUM_LAYERS, final_time=FINAL_TIME)
    assert pred.shape == (BATCH, OUTPUT_DIM), pred.shape
    assert jnp.allclose(pred, ref, rtol=2e-4, atol=2e-4), (pred, ref)

    print("KERNEL_OK")
</pallas_src>

<mosaic_0001>
module attributes {stable_mosaic.version = 11 : i64} {
  func.func @hamilnet_kernel(%arg0: i32, %arg1: i32, %arg2: memref<8x128xf32, #tpu.memory_space<vmem>>, %arg3: memref<1x128x128xf32, #tpu.memory_space<vmem>>, %arg4: memref<1x1x128xf32, #tpu.memory_space<vmem>>, %arg5: memref<1x1x128xf32, #tpu.memory_space<vmem>>, %arg6: memref<1x128x128xf32, #tpu.memory_space<vmem>>, %arg7: memref<128x128xf32, #tpu.memory_space<vmem>>, %arg8: memref<128x128xf32, #tpu.memory_space<vmem>>, %arg9: memref<1x128xf32, #tpu.memory_space<vmem>>, %arg10: memref<8x128xf32, #tpu.memory_space<vmem>>, %arg11: memref<8x128xf32, #tpu.memory_space<vmem>>, %arg12: memref<8x128xf32, #tpu.memory_space<vmem>>) attributes {dimension_semantics = [#tpu.dimension_semantics<parallel>, #tpu.dimension_semantics<arbitrary>], iteration_bounds = array<i64: 1, 3>, scalar_prefetch = 0 : i64, scratch_operands = 2 : i64, tpu.core_type = #tpu.core_type<tc>, window_params = [{transform_indices = @transform_0, window_bounds = array<i64: 8, 128>}, {transform_indices = @transform_1, window_bounds = array<i64: 1, 128, 128>}, {transform_indices = @transform_2, window_bounds = array<i64: 1, 1, 128>}, {transform_indices = @transform_3, window_bounds = array<i64: 1, 1, 128>}, {transform_indices = @transform_4, window_bounds = array<i64: 1, 128, 128>}, {pipeline_mode = #tpu.pipeline_mode<synchronous>, transform_indices = @transform_5, window_bounds = array<i64: 128, 128>}, {pipeline_mode = #tpu.pipeline_mode<synchronous>, transform_indices = @transform_6, window_bounds = array<i64: 128, 128>}, {pipeline_mode = #tpu.pipeline_mode<synchronous>, transform_indices = @transform_7, window_bounds = array<i64: 1, 128>}, {transform_indices = @transform_8, window_bounds = array<i64: 8, 128>}]} {
    %c0_i32 = arith.constant 0 : i32
    %0 = arith.cmpi eq, %arg1, %c0_i32 : i32
    %1 = arith.extui %0 : i1 to i32
    %c0_i32_0 = arith.constant 0 : i32
    %2 = arith.cmpi ne, %1, %c0_i32_0 : i32
    scf.if %2 {
      %c0_25 = arith.constant 0 : index
      %c0_26 = arith.constant 0 : index
      %30 = vector.load %arg2[%c0_25, %c0_26] : memref<8x128xf32, #tpu.memory_space<vmem>>, vector<8x128xf32>
      %c0_27 = arith.constant 0 : index
      %c0_28 = arith.constant 0 : index
      %31 = vector.load %arg11[%c0_27, %c0_28] : memref<8x128xf32, #tpu.memory_space<vmem>>, vector<8x128xf32>
      tpu.vector_store %arg11[%c0_27, %c0_28], %30 {strides = array<i32>} : memref<8x128xf32, #tpu.memory_space<vmem>>, vector<8x128xf32>,
      %cst_29 = arith.constant 0.000000e+00 : f32
      %32 = vector.broadcast %cst_29 : f32 to vector<8x128xf32>
      %c0_30 = arith.constant 0 : index
      %c0_31 = arith.constant 0 : index
      %33 = vector.load %arg12[%c0_30, %c0_31] : memref<8x128xf32, #tpu.memory_space<vmem>>, vector<8x128xf32>
      tpu.vector_store %arg12[%c0_30, %c0_31], %32 {strides = array<i32>} : memref<8x128xf32, #tpu.memory_space<vmem>>, vector<8x128xf32>,
    } else {
    }
    %c0 = arith.constant 0 : index
    %c0_1 = arith.constant 0 : index
    %c0_2 = arith.constant 0 : index
    %3 = vector.load %arg3[%c0, %c0_1, %c0_2] : memref<1x128x128xf32, #tpu.memory_space<vmem>>, vector<1x128x128xf32>
    %4 = vector.shape_cast %3 : vector<1x128x128xf32> to vector<128x128xf32>
    %c0_3 = arith.constant 0 : index
    %c0_4 = arith.constant 0 : index
    %c0_5 = arith.constant 0 : index
    %5 = vector.load %arg6[%c0_3, %c0_4, %c0_5] : memref<1x128x128xf32, #tpu.memory_space<vmem>>, vector<1x128x128xf32>
    %6 = vector.shape_cast %5 : vector<1x128x128xf32> to vector<128x128xf32>
    %c0_6 = arith.constant 0 : index
    %c0_7 = arith.constant 0 : index
    %7 = vector.load %arg11[%c0_6, %c0_7] : memref<8x128xf32, #tpu.memory_space<vmem>>, vector<8x128xf32>
    %cst = arith.constant dense<0.000000e+00> : vector<8x128xf32>
    %8 = tpu.matmul %7, %4, %cst {dimension_numbers = #tpu.dot_dimension_numbers<[1], [1], [0], [0], [0, 0, 1, 0], [], []>} : vector<8x128xf32>, vector<128x128xf32>, vector<8x128xf32> -> vector<8x128xf32>
    %c0_8 = arith.constant 0 : index
    %c0_9 = arith.constant 0 : index
    %c0_10 = arith.constant 0 : index
    %9 = vector.load %arg4[%c0_8, %c0_9, %c0_10] : memref<1x1x128xf32, #tpu.memory_space<vmem>>, vector<1x1x128xf32>
    %10 = vector.shape_cast %9 : vector<1x1x128xf32> to vector<1x128xf32>
    %11 = vector.broadcast %10 : vector<1x128xf32> to vector<8x128xf32>
    %12 = arith.addf %8, %11 : vector<8x128xf32>
    %cst_11 = arith.constant 0.000000e+00 : f32
    %13 = vector.broadcast %cst_11 : f32 to vector<8x128xf32>
    %14 = arith.maximumf %12, %13 : vector<8x128xf32>
    %cst_12 = arith.constant dense<0.000000e+00> : vector<8x128xf32>
    %15 = tpu.matmul %14, %4, %cst_12 {dimension_numbers = #tpu.dot_dimension_numbers<[1], [0], [0], [1], [0, 0, 1, 1], [], []>} : vector<8x128xf32>, vector<128x128xf32>, vector<8x128xf32> -> vector<8x128xf32>
    %c0_13 = arith.constant 0 : index
    %c0_14 = arith.constant 0 : index
    %16 = vector.load %arg12[%c0_13, %c0_14] : memref<8x128xf32, #tpu.memory_space<vmem>>, vector<8x128xf32>
    %c0_15 = arith.constant 0 : index
    %c0_16 = arith.constant 0 : index
    %c0_17 = arith.constant 0 : index
    %17 = vector.load %arg5[%c0_15, %c0_16, %c0_17] : memref<1x1x128xf32, #tpu.memory_space<vmem>>, vector<1x1x128xf32>
    %18 = vector.shape_cast %17 : vector<1x1x128xf32> to vector<1x128xf32>
    %19 = vector.broadcast %18 : vector<1x128xf32> to vector<8x128xf32>
    %20 = arith.mulf %15, %19 : vector<8x128xf32>
    %21 = arith.addf %16, %20 : vector<8x128xf32>
    %c0_18 = arith.constant 0 : index
    %c0_19 = arith.constant 0 : index
    %22 = vector.load %arg12[%c0_18, %c0_19] : memref<8x128xf32, #tpu.memory_space<vmem>>, vector<8x128xf32>
    tpu.vector_store %arg12[%c0_18, %c0_19], %21 {strides = array<i32>} : memref<8x128xf32, #tpu.memory_space<vmem>>, vector<8x128xf32>,
    %cst_20 = arith.constant dense<0.000000e+00> : vector<8x128xf32>
    %23 = tpu.matmul %21, %6, %cst_20 {dimension_numbers = #tpu.dot_dimension_numbers<[1], [1], [0], [0], [0, 0, 1, 0], [], []>} : vector<8x128xf32>, vector<128x128xf32>, vector<8x128xf32> -> vector<8x128xf32>
    %cst_21 = arith.constant dense<0.000000e+00> : vector<8x128xf32>
    %24 = tpu.matmul %23, %6, %cst_21 {dimension_numbers = #tpu.dot_dimension_numbers<[1], [0], [0], [1], [0, 0, 1, 1], [], []>} : vector<8x128xf32>, vector<128x128xf32>, vector<8x128xf32> -> vector<8x128xf32>
    %25 = arith.addf %7, %24 : vector<8x128xf32>
    %c0_22 = arith.constant 0 : index
    %c0_23 = arith.constant 0 : index
    %26 = vector.load %arg11[%c0_22, %c0_23] : memref<8x128xf32, #tpu.memory_space<vmem>>, vector<8x128xf32>
    tpu.vector_store %arg11[%c0_22, %c0_23], %25 {strides = array<i32>} : memref<8x128xf32, #tpu.memory_space<vmem>>, vector<8x128xf32>,
    %c2_i32 = arith.constant 2 : i32
    %27 = arith.cmpi eq, %arg1, %c2_i32 : i32
    %28 = arith.extui %27 : i1 to i32
    %c0_i32_24 = arith.constant 0 : i32
    %29 = arith.cmpi ne, %28, %c0_i32_24 : i32
    scf.if %29 {
      %c0_25 = arith.constant 0 : index
      %c0_26 = arith.constant 0 : index
      %30 = vector.load %arg7[%c0_25, %c0_26] : memref<128x128xf32, #tpu.memory_space<vmem>>, vector<128x128xf32>
      %cst_27 = arith.constant dense<0.000000e+00> : vector<8x128xf32>
      %31 = tpu.matmul %25, %30, %cst_27 {dimension_numbers = #tpu.dot_dimension_numbers<[1], [0], [0], [1], [0, 0, 1, 1], [], []>} : vector<8x128xf32>, vector<128x128xf32>, vector<8x128xf32> -> vector<8x128xf32>
      %c0_28 = arith.constant 0 : index
      %c0_29 = arith.constant 0 : index
      %32 = vector.load %arg8[%c0_28, %c0_29] : memref<128x128xf32, #tpu.memory_space<vmem>>, vector<128x128xf32>
      %cst_30 = arith.constant dense<0.000000e+00> : vector<8x128xf32>
      %33 = tpu.matmul %21, %32, %cst_30 {dimension_numbers = #tpu.dot_dimension_numbers<[1], [0], [0], [1], [0, 0, 1, 1], [], []>} : vector<8x128xf32>, vector<128x128xf32>, vector<8x128xf32> -> vector<8x128xf32>
      %34 = arith.addf %31, %33 : vector<8x128xf32>
      %c0_31 = arith.constant 0 : index
      %c0_32 = arith.constant 0 : index
      %35 = vector.load %arg9[%c0_31, %c0_32] : memref<1x128xf32, #tpu.memory_space<vmem>>, vector<1x128xf32>
      %36 = vector.broadcast %35 : vector<1x128xf32> to vector<8x128xf32>
      %37 = arith.addf %34, %36 : vector<8x128xf32>
      %c0_33 = arith.constant 0 : index
      %c0_34 = arith.constant 0 : index
      %38 = vector.load %arg10[%c0_33, %c0_34] : memref<8x128xf32, #tpu.memory_space<vmem>>, vector<8x128xf32>
      tpu.vector_store %arg10[%c0_33, %c0_34], %37 {strides = array<i32>} : memref<8x128xf32, #tpu.memory_space<vmem>>, vector<8x128xf32>,
    } else {
    }
    return
  }
  func.func @transform_0(%arg0: i32, %arg1: i32) -> (i32, i32) {
    %c0_i32 = arith.constant 0 : i32
    %c0_i32_0 = arith.constant 0 : i32
    return %arg0, %c0_i32 : i32, i32
  }
  func.func @transform_1(%arg0: i32, %arg1: i32) -> (i32, i32, i32) {
    %c0_i32 = arith.constant 0 : i32
    %c0_i32_0 = arith.constant 0 : i32
    %c0_i32_1 = arith.constant 0 : i32
    return %arg1, %c0_i32, %c0_i32_0 : i32, i32, i32
  }
  func.func @transform_2(%arg0: i32, %arg1: i32) -> (i32, i32, i32) {
    %c0_i32 = arith.constant 0 : i32
    %c0_i32_0 = arith.constant 0 : i32
    %c0_i32_1 = arith.constant 0 : i32
    return %arg1, %c0_i32, %c0_i32_0 : i32, i32, i32
  }
  func.func @transform_3(%arg0: i32, %arg1: i32) -> (i32, i32, i32) {
    %c0_i32 = arith.constant 0 : i32
    %c0_i32_0 = arith.constant 0 : i32
    %c0_i32_1 = arith.constant 0 : i32
    return %arg1, %c0_i32, %c0_i32_0 : i32, i32, i32
  }
  func.func @transform_4(%arg0: i32, %arg1: i32) -> (i32, i32, i32) {
    %c0_i32 = arith.constant 0 : i32
    %c0_i32_0 = arith.constant 0 : i32
    %c0_i32_1 = arith.constant 0 : i32
    return %arg1, %c0_i32, %c0_i32_0 : i32, i32, i32
  }
  func.func @transform_5(%arg0: i32, %arg1: i32) -> (i32, i32) {
    %c0_i32 = arith.constant 0 : i32
    %c0_i32_0 = arith.constant 0 : i32
    %c0_i32_1 = arith.constant 0 : i32
    return %c0_i32, %c0_i32_0 : i32, i32
  }
  func.func @transform_6(%arg0: i32, %arg1: i32) -> (i32, i32) {
    %c0_i32 = arith.constant 0 : i32
    %c0_i32_0 = arith.constant 0 : i32
    %c0_i32_1 = arith.constant 0 : i32
    return %c0_i32, %c0_i32_0 : i32, i32
  }
  func.func @transform_7(%arg0: i32, %arg1: i32) -> (i32, i32) {
    %c0_i32 = arith.constant 0 : i32
    %c0_i32_0 = arith.constant 0 : i32
    %c0_i32_1 = arith.constant 0 : i32
    return %c0_i32, %c0_i32_0 : i32, i32
  }
  func.func @transform_8(%arg0: i32, %arg1: i32) -> (i32, i32) {
    %c0_i32 = arith.constant 0 : i32
    %c0_i32_0 = arith.constant 0 : i32
    return %arg0, %c0_i32 : i32, i32
  }
}

</mosaic_0001>

<llo_original>
// kernel: tpu_custom_call.1
$region0: #{tpu_custom_call.1}
  #allocation0 [shape = 'u32[]', space=smem, size = 0x4, offset = 0x4, fixed_abs, tag = 'smem constant byte address 0x4 - core index']
  #allocation1 [shape = 'u32[72,128]{1,0:T(1,128)}', space=vmem, size = 0x9000, scoped, tag = 'internal scratch']
  #allocation2 [shape = 'f32[8,128]{1,0:T(8,128)}', space=vmem, size = 0x1000, scoped, tag = 'scratch operand']
  #allocation3 [shape = 'f32[8,128]{1,0:T(8,128)}', space=vmem, size = 0x1000, scoped, tag = 'scratch operand']
  %s0 = inlined_call_operand.hbm [shape: f32[8,128], index: 0, kind: input, shape index: {}]
  %s1 = inlined_call_operand.hbm [shape: f32[3,128,128], index: 1, kind: input, shape index: {}]
  %s2 = inlined_call_operand.hbm [shape: f32[3,1,128], index: 2, kind: input, shape index: {}]
  %s3 = inlined_call_operand.hbm [shape: f32[3,1,128], index: 3, kind: input, shape index: {}]
  %s4 = inlined_call_operand.hbm [shape: f32[3,128,128], index: 4, kind: input, shape index: {}]
  %s5 = inlined_call_operand.hbm [shape: f32[128,128], index: 5, kind: input, shape index: {}]
  %s6 = inlined_call_operand.hbm [shape: f32[128,128], index: 6, kind: input, shape index: {}]
  %s7 = inlined_call_operand.vmem [shape: f32[1,128], index: 7, kind: input, shape index: {}]
  %s8 = inlined_call_operand.hbm [shape: f32[8,128], index: 8, kind: output, shape index: {}]
  %s9 = sld [smem:[#allocation0]]
  $region101: #{tpu_custom_call.1} parent=0
    _
  %s11 = ssub.s32 1, %s9
  %s12 = scalar_select 0, %s11, %s9
  $region1: #{tpu_custom_call.1} parent=0
    #allocation4 [shape = 'u8[4096]{0}', space=vmem, size = 0x1000, scoped, tag = 'input window, operand 0, single buffered']
    #allocation5 [shape = 's32[2]{0}', space=sflag, size = 0x8, scoped, tag = 'scoped memory for tpu_custom_call.1']
    #allocation6 [shape = 's32[2]{0}', space=sflag, size = 0x8, scoped, tag = 'scoped memory for tpu_custom_call.1']
    #allocation7 [shape = 'u8[131072]{0}', space=vmem, size = 0x20000, scoped, tag = 'input window, operand 1']
    #allocation8 [shape = 's32[2]{0}', space=sflag, size = 0x8, scoped, tag = 'scoped memory for tpu_custom_call.1']
    #allocation9 [shape = 'u8[1024]{0}', space=vmem, size = 0x400, scoped, tag = 'input window, operand 2']
    #allocation10 [shape = 'u8[1024]{0}', space=vmem, size = 0x400, scoped, tag = 'input window, operand 3']
    #allocation11 [shape = 's32[2]{0}', space=sflag, size = 0x8, scoped, tag = 'scoped memory for tpu_custom_call.1']
    #allocation12 [shape = 'u8[131072]{0}', space=vmem, size = 0x20000, scoped, tag = 'input window, operand 4']
    #allocation13 [shape = 'u8[65536]{0}', space=vmem, size = 0x10000, scoped, tag = 'input window, operand 5, single buffered']
    #allocation14 [shape = 's32[1]{0}', space=sflag, size = 0x4, scoped, tag = 'scoped memory for tpu_custom_call.1']
    #allocation15 [shape = 'u8[65536]{0}', space=vmem, size = 0x10000, scoped, tag = 'input window, operand 6, single buffered']
    #allocation16 [shape = 'u8[4096]{0}', space=vmem, size = 0x1000, scoped, tag = 'output window, operand 0, single buffered']
    %13 = vsyncpa [#allocation5], 0
    %14 = vsyncpa [#allocation8], 0
    %s15 = scalar_lea.sflag [#allocation8], 1
    %16 = vsyncpa %s15, 0
    %17 = vsyncpa [#allocation11], 0
    %s18 = scalar_lea.sflag [#allocation11], 1
    %19 = vsyncpa %s18, 0
    %20 = vsyncpa [#allocation14], 0
    %21 = vsyncpa [#allocation6], 0
    loop: start=0, step=1, limit=5
    $region2: #{tpu_custom_call.1} parent=1 // loop_pre_header
      _
    $region3: #{tpu_custom_call.1} parent=1 // loop_header
      %s23 = sphi 0, %s27
      %p24 = scmp.ge.s32.totalorder %s23, 5
      %s30 = sphi 0, %s42
      %s31 = sphi 0, %s38
      %s32 = sphi 0, %s30
      %s33 = sphi 0, %s31
      %s34 = sphi 0, %s32
      %s35 = sphi 0, %s33
      %s45 = sphi 0, %s47
      %s48 = sphi 0, %s45
      %s49 = sphi 0, %s48
      %s65 = sphi 0, %s49
      %s71 = sphi 0, %s73
      %s74 = sphi 0, %s71
      %s75 = sphi 0, %s74
      %s91 = sphi 0, %s75
      %s97 = sphi 0, %s99
      %s100 = sphi 0, %s97
      %s101 = sphi 0, %s100
      %s117 = sphi 0, %s101
      %s123 = sphi 0, %s125
      %s126 = sphi 0, %s123
      %s127 = sphi 0, %s126
      %s143 = sphi 0, %s127
      %s149 = sphi 0, %s151
      %s152 = sphi 0, %s149
      %s153 = sphi 0, %s152
      %s169 = sphi 0, %s153
      %s173 = sphi 0, %s173
      %s175 = sphi 0, %s173
      %s176 = sphi 0, %s175
      %s190 = sphi 0, %s176
      %s194 = sphi 0, %s194
      %s196 = sphi 0, %s194
      %s197 = sphi 0, %s196
      %s211 = sphi 0, %s197
      %s215 = sphi 0, %s215
      %s217 = sphi 0, %s215
      %s218 = sphi 0, %s217
      %s232 = sphi 0, %s218
      %s238 = sphi 0, %s240
      %s241 = sphi 0, %s238
      %s242 = sphi 0, %s241
      %s258 = sphi 0, %s242
    $region4: #{tpu_custom_call.1} parent=1 // loop_header_branch
      %26 = sbr.rel (%p24) target = $region8
    $region5: #{tpu_custom_call.1} parent=1 // loop_body
      %s28 = ssub.s32 %s23, 1
      %s29 = ssub.s32 %s23, 2
      %s36 = sadd.s32 1, %s31
      %p37 = scmp.ge.s32.totalorder %s36, 3
      %s38 = scalar_select %p37, 0, %s36
      %s39 = sadd.s32 1, %s30
      %s40 = scalar_select %p37, %s39, %s30
      %p41 = scmp.ge.s32.totalorder %s40, 1
      %s42 = scalar_select %p41, 0, %s40
      %s43 = ssub.s32 %s30, %s42
      %p44 = scmp.eq.s32.totalorder %s43, 0
      %s46 = sadd.s32 %s45, 1
      %s47 = scalar_select %p44, %s45, %s46
      %p50 = pneg %p44
      %p51 = scmp.eq.s32.totalorder %s23, 2
      %p52 = por %p50, %p51
      %p53 = scmp.ne.s32.totalorder %s45, %s48
      %p54 = scmp.eq.s32.totalorder %s23, 0
      %p55 = por %p53, %p54
      %p56 = scmp.ne.s32.totalorder %s45, %s48
      %p57 = scmp.eq.s32.totalorder %s28, 2
      %p58 = por %p56, %p57
      %p59 = scmp.ne.s32.totalorder %s48, %s49
      %p60 = scmp.eq.s32.totalorder %s28, 0
      %p61 = por %p59, %p60
      %p62 = scmp.ne.s32.totalorder %s48, %s49
      %p63 = scmp.eq.s32.totalorder %s29, 2
      %p64 = por %p62, %p63
      %p66 = scmp.ne.s32.totalorder %s49, %s65
      %p67 = scmp.eq.s32.totalorder %s29, 0
      %p68 = por %p66, %p67
      %s69 = ssub.s32 %s31, %s38
      %p70 = scmp.eq.s32.totalorder %s69, 0
      %s72 = sadd.s32 %s71, 1
      %s73 = scalar_select %p70, %s71, %s72
      %p76 = pneg %p70
      %p77 = scmp.eq.s32.totalorder %s23, 2
      %p78 = por %p76, %p77
      %p79 = scmp.ne.s32.totalorder %s71, %s74
      %p80 = scmp.eq.s32.totalorder %s23, 0
      %p81 = por %p79, %p80
      %p82 = scmp.ne.s32.totalorder %s71, %s74
      %p83 = scmp.eq.s32.totalorder %s28, 2
      %p84 = por %p82, %p83
      %p85 = scmp.ne.s32.totalorder %s74, %s75
      %p86 = scmp.eq.s32.totalorder %s28, 0
      %p87 = por %p85, %p86
      %p88 = scmp.ne.s32.totalorder %s74, %s75
      %p89 = scmp.eq.s32.totalorder %s29, 2
      %p90 = por %p88, %p89
      %p92 = scmp.ne.s32.totalorder %s75, %s91
      %p93 = scmp.eq.s32.totalorder %s29, 0
      %p94 = por %p92, %p93
      %s95 = ssub.s32 %s31, %s38
      %p96 = scmp.eq.s32.totalorder %s95, 0
      %s98 = sadd.s32 %s97, 1
      %s99 = scalar_select %p96, %s97, %s98
      %p102 = pneg %p96
      %p103 = scmp.eq.s32.totalorder %s23, 2
      %p104 = por %p102, %p103
      %p105 = scmp.ne.s32.totalorder %s97, %s100
      %p106 = scmp.eq.s32.totalorder %s23, 0
      %p107 = por %p105, %p106
      %p108 = scmp.ne.s32.totalorder %s97, %s100
      %p109 = scmp.eq.s32.totalorder %s28, 2
      %p110 = por %p108, %p109
      %p111 = scmp.ne.s32.totalorder %s100, %s101
      %p112 = scmp.eq.s32.totalorder %s28, 0
      %p113 = por %p111, %p112
      %p114 = scmp.ne.s32.totalorder %s100, %s101
      %p115 = scmp.eq.s32.totalorder %s29, 2
      %p116 = por %p114, %p115
      %p118 = scmp.ne.s32.totalorder %s101, %s117
      %p119 = scmp.eq.s32.totalorder %s29, 0
      %p120 = por %p118, %p119
      %s121 = ssub.s32 %s31, %s38
      %p122 = scmp.eq.s32.totalorder %s121, 0
      %s124 = sadd.s32 %s123, 1
      %s125 = scalar_select %p122, %s123, %s124
      %p128 = pneg %p122
      %p129 = scmp.eq.s32.totalorder %s23, 2
      %p130 = por %p128, %p129
      %p131 = scmp.ne.s32.totalorder %s123, %s126
      %p132 = scmp.eq.s32.totalorder %s23, 0
      %p133 = por %p131, %p132
      %p134 = scmp.ne.s32.totalorder %s123, %s126
      %p135 = scmp.eq.s32.totalorder %s28, 2
      %p136 = por %p134, %p135
      %p137 = scmp.ne.s32.totalorder %s126, %s127
      %p138 = scmp.eq.s32.totalorder %s28, 0
      %p139 = por %p137, %p138
      %p140 = scmp.ne.s32.totalorder %s126, %s127
      %p141 = scmp.eq.s32.totalorder %s29, 2
      %p142 = por %p140, %p141
      %p144 = scmp.ne.s32.totalorder %s127, %s143
      %p145 = scmp.eq.s32.totalorder %s29, 0
      %p146 = por %p144, %p145
      %s147 = ssub.s32 %s31, %s38
      %p148 = scmp.eq.s32.totalorder %s147, 0
      %s150 = sadd.s32 %s149, 1
      %s151 = scalar_select %p148, %s149, %s150
      %p154 = pneg %p148
      %p155 = scmp.eq.s32.totalorder %s23, 2
      %p156 = por %p154, %p155
      %p157 = scmp.ne.s32.totalorder %s149, %s152
      %p158 = scmp.eq.s32.totalorder %s23, 0
      %p159 = por %p157, %p158
      %p160 = scmp.ne.s32.totalorder %s149, %s152
      %p161 = scmp.eq.s32.totalorder %s28, 2
      %p162 = por %p160, %p161
      %p163 = scmp.ne.s32.totalorder %s152, %s153
      %p164 = scmp.eq.s32.totalorder %s28, 0
      %p165 = por %p163, %p164
      %p166 = scmp.ne.s32.totalorder %s152, %s153
      %p167 = scmp.eq.s32.totalorder %s29, 2
      %p168 = por %p166, %p167
      %p170 = scmp.ne.s32.totalorder %s153, %s169
      %p171 = scmp.eq.s32.totalorder %s29, 0
      %p172 = por %p170, %p171
      %s174 = sadd.s32 %s173, 1
      %p177 = scmp.eq.s32.totalorder %s23, 2
      %p178 = scmp.ne.s32.totalorder %s173, %s175
      %p179 = scmp.eq.s32.totalorder %s23, 0
      %p180 = por %p178, %p179
      %p181 = scmp.ne.s32.totalorder %s173, %s175
      %p182 = scmp.eq.s32.totalorder %s28, 2
      %p183 = por %p181, %p182
      %p184 = scmp.ne.s32.totalorder %s175, %s176
      %p185 = scmp.eq.s32.totalorder %s28, 0
      %p186 = por %p184, %p185
      %p187 = scmp.ne.s32.totalorder %s175, %s176
      %p188 = scmp.eq.s32.totalorder %s29, 2
      %p189 = por %p187, %p188
      %p191 = scmp.ne.s32.totalorder %s176, %s190
      %p192 = scmp.eq.s32.totalorder %s29, 0
      %p193 = por %p191, %p192
      %s195 = sadd.s32 %s194, 1
      %p198 = scmp.eq.s32.totalorder %s23, 2
      %p199 = scmp.ne.s32.totalorder %s194, %s196
      %p200 = scmp.eq.s32.totalorder %s23, 0
      %p201 = por %p199, %p200
      %p202 = scmp.ne.s32.totalorder %s194, %s196
      %p203 = scmp.eq.s32.totalorder %s28, 2
      %p204 = por %p202, %p203
      %p205 = scmp.ne.s32.totalorder %s196, %s197
      %p206 = scmp.eq.s32.totalorder %s28, 0
      %p207 = por %p205, %p206
      %p208 = scmp.ne.s32.totalorder %s196, %s197
      %p209 = scmp.eq.s32.totalorder %s29, 2
      %p210 = por %p208, %p209
      %p212 = scmp.ne.s32.totalorder %s197, %s211
      %p213 = scmp.eq.s32.totalorder %s29, 0
      %p214 = por %p212, %p213
      %s216 = sadd.s32 %s215, 1
      %p219 = scmp.eq.s32.totalorder %s23, 2
      %p220 = scmp.ne.s32.totalorder %s215, %s217
      %p221 = scmp.eq.s32.totalorder %s23, 0
      %p222 = por %p220, %p221
      %p223 = scmp.ne.s32.totalorder %s215, %s217
      %p224 = scmp.eq.s32.totalorder %s28, 2
      %p225 = por %p223, %p224
      %p226 = scmp.ne.s32.totalorder %s217, %s218
      %p227 = scmp.eq.s32.totalorder %s28, 0
      %p228 = por %p226, %p227
      %p229 = scmp.ne.s32.totalorder %s217, %s218
      %p230 = scmp.eq.s32.totalorder %s29, 2
      %p231 = por %p229, %p230
      %p233 = scmp.ne.s32.totalorder %s218, %s232
      %p234 = scmp.eq.s32.totalorder %s29, 0
      %p235 = por %p233, %p234
      %s236 = ssub.s32 %s30, %s42
      %p237 = scmp.eq.s32.totalorder %s236, 0
      %s239 = sadd.s32 %s238, 1
      %s240 = scalar_select %p237, %s238, %s239
      %p243 = pneg %p237
      %p244 = scmp.eq.s32.totalorder %s23, 2
      %p245 = por %p243, %p244
      %p246 = scmp.ne.s32.totalorder %s238, %s241
      %p247 = scmp.eq.s32.totalorder %s23, 0
      %p248 = por %p246, %p247
      %p249 = scmp.ne.s32.totalorder %s238, %s241
      %p250 = scmp.eq.s32.totalorder %s28, 2
      %p251 = por %p249, %p250
      %p252 = scmp.ne.s32.totalorder %s241, %s242
      %p253 = scmp.eq.s32.totalorder %s28, 0
      %p254 = por %p252, %p253
      %p255 = scmp.ne.s32.totalorder %s241, %s242
      %p256 = scmp.eq.s32.totalorder %s29, 2
      %p257 = por %p255, %p256
      %p259 = scmp.ne.s32.totalorder %s242, %s258
      %p260 = scmp.eq.s32.totalorder %s29, 0
      %p261 = por %p259, %p260
      %p262 = scmp.le.s32.totalorder 1, %s23
      %p263 = scmp.lt.s32.totalorder %s23, 4
      %p264 = pnand %p262, %p263
      %p265 = pneg %p264
      // Predicated region
      $region9: #{tpu_custom_call.1} parent=5 // pred_check
        _
      $region10: #{tpu_custom_call.1} parent=5 // pred_check_branch
        %267 = sbr.rel (%p264) target = $region12
      $region11: #{tpu_custom_call.1} parent=5 // pred_region
        %s268 = ssub.s32 %s23, 1
        // Predicated region
        $region13: #{tpu_custom_call.1} parent=11 // pred_check
          %p269 = pneg %p61
        $region14: #{tpu_custom_call.1} parent=11 // pred_check_branch
          %271 = sbr.rel (%p269) target = $region16
        $region15: #{tpu_custom_call.1} parent=11 // pred_region
          %273 = vsyncadd [#allocation5], 0
          %s274 = smul.addr %s32, 8
          %s275 = scalar_lea.hbm %s0, %s274
          %s277 = sshll.u32 %s275, 4
          %s278 = int_to_ptr.hbm [resolvable:$true] %s277
          %s279 = sshll.u32 [#allocation4], 4
          %s280 = int_to_ptr.vmem [resolvable:$true] %s279
          %282 = dma.hbm_to_vmem [thread:$0]  %s278, 128, %s280, [#allocation5]
        $region16: #{tpu_custom_call.1} parent=11 // pred_fallthru
          _
        // Predicated region
        $region17: #{tpu_custom_call.1} parent=11 // pred_check
          %p283 = pneg %p186
        $region18: #{tpu_custom_call.1} parent=11 // pred_check_branch
          %285 = sbr.rel (%p283) target = $region20
        $region19: #{tpu_custom_call.1} parent=11 // pred_region
          %287 = vsyncadd [#allocation14], 0
          %s288 = sshll.u32 %s5, 4
          %s289 = int_to_ptr.hbm [resolvable:$true] %s288
          %s290 = sshll.u32 [#allocation13], 4
          %s291 = int_to_ptr.vmem [resolvable:$true] %s290
          %296 = dma.hbm_to_vmem [thread:$0]  %s289, 2048, %s291, [#allocation14], 128, 128, 8
        $region20: #{tpu_custom_call.1} parent=11 // pred_fallthru
          _
        // Predicated region
        $region21: #{tpu_custom_call.1} parent=11 // pred_check
          %p297 = pneg %p207
        $region22: #{tpu_custom_call.1} parent=11 // pred_check_branch
          %299 = sbr.rel (%p297) target = $region24
        $region23: #{tpu_custom_call.1} parent=11 // pred_region
          %301 = vsyncadd [#allocation14], 0
          %s302 = sshll.u32 %s6, 4
          %s303 = int_to_ptr.hbm [resolvable:$true] %s302
          %s304 = sshll.u32 [#allocation15], 4
          %s305 = int_to_ptr.vmem [resolvable:$true] %s304
          %310 = dma.hbm_to_vmem [thread:$0]  %s303, 2048, %s305, [#allocation14], 128, 128, 8
        $region24: #{tpu_custom_call.1} parent=11 // pred_fallthru
          _
        // Predicated region
        $region25: #{tpu_custom_call.1} parent=11 // pred_check
          %p311 = pneg %p228
        $region26: #{tpu_custom_call.1} parent=11 // pred_check_branch
          %313 = sbr.rel (%p311) target = $region28
        $region27: #{tpu_custom_call.1} parent=11 // pred_region
          _
        $region28: #{tpu_custom_call.1} parent=11 // pred_fallthru
          _
      $region12: #{tpu_custom_call.1} parent=5 // pred_fallthru
        _
      %p314 = scmp.lt.s32.totalorder %s23, 3
      // Predicated region
      $region29: #{tpu_custom_call.1} parent=5 // pred_check
        %p315 = pneg %p314
      $region30: #{tpu_custom_call.1} parent=5 // pred_check_branch
        %317 = sbr.rel (%p315) target = $region32
      $region31: #{tpu_custom_call.1} parent=5 // pred_region
        // Predicated region
        $region33: #{tpu_custom_call.1} parent=31 // pred_check
          %p318 = pneg %p81
        $region34: #{tpu_custom_call.1} parent=31 // pred_check_branch
          %320 = sbr.rel (%p318) target = $region36
        $region35: #{tpu_custom_call.1} parent=31 // pred_region
          %s321 = sand.u32 %s23, 1
          %s322 = scalar_lea.sflag [#allocation8], %s321
          %s323 = sand.u32 %s71, 1
          %s324 = smul.addr %s323, 128
          %s325 = scalar_lea.vmem [#allocation7], %s324
          %327 = vsyncadd %s322, 0
          %s328 = smul.addr %s31, 16
          %s329 = smul.addr %s328, 8
          %s330 = scalar_lea.hbm %s1, %s329
          %s331 = sshll.u32 %s330, 4
          %s332 = int_to_ptr.hbm [resolvable:$true] %s331
          %s333 = sshll.u32 %s325, 4
          %s334 = int_to_ptr.vmem [resolvable:$true] %s333
          %339 = dma.hbm_to_vmem [thread:$0]  %s332, 2048, %s334, %s322, 128, 128, 8
        $region36: #{tpu_custom_call.1} parent=31 // pred_fallthru
          _
        // Predicated region
        $region37: #{tpu_custom_call.1} parent=31 // pred_check
          %p340 = pneg %p107
        $region38: #{tpu_custom_call.1} parent=31 // pred_check_branch
          %342 = sbr.rel (%p340) target = $region40
        $region39: #{tpu_custom_call.1} parent=31 // pred_region
          %s343 = sand.u32 %s23, 1
          %s344 = scalar_lea.sflag [#allocation8], %s343
          %s345 = sand.u32 %s97, 1
          %s346 = scalar_lea.vmem [#allocation9], %s345
          %348 = vsyncadd %s344, 0
          %s349 = scalar_lea.hbm %s2, %s31
          %s351 = sshll.u32 %s349, 4
          %s352 = int_to_ptr.hbm [resolvable:$true] %s351
          %s353 = sshll.u32 %s346, 4
          %s354 = int_to_ptr.vmem [resolvable:$true] %s353
          %356 = dma.hbm_to_vmem [thread:$0]  %s352, 16, %s354, %s344
        $region40: #{tpu_custom_call.1} parent=31 // pred_fallthru
          _
        // Predicated region
        $region41: #{tpu_custom_call.1} parent=31 // pred_check
          %p357 = pneg %p133
        $region42: #{tpu_custom_call.1} parent=31 // pred_check_branch
          %359 = sbr.rel (%p357) target = $region44
        $region43: #{tpu_custom_call.1} parent=31 // pred_region
          %s360 = sand.u32 %s23, 1
          %s361 = scalar_lea.sflag [#allocation11], %s360
          %s362 = sand.u32 %s123, 1
          %s363 = scalar_lea.vmem [#allocation10], %s362
          %365 = vsyncadd %s361, 0
          %s366 = scalar_lea.hbm %s3, %s31
          %s368 = sshll.u32 %s366, 4
          %s369 = int_to_ptr.hbm [resolvable:$true] %s368
          %s370 = sshll.u32 %s363, 4
          %s371 = int_to_ptr.vmem [resolvable:$true] %s370
          %373 = dma.hbm_to_vmem [thread:$0]  %s369, 16, %s371, %s361
        $region44: #{tpu_custom_call.1} parent=31 // pred_fallthru
          _
        // Predicated region
        $region45: #{tpu_custom_call.1} parent=31 // pred_check
          %p374 = pneg %p159
        $region46: #{tpu_custom_call.1} parent=31 // pred_check_branch
          %376 = sbr.rel (%p374) target = $region48
        $region47: #{tpu_custom_call.1} parent=31 // pred_region
          %s377 = sand.u32 %s23, 1
          %s378 = scalar_lea.sflag [#allocation11], %s377
          %s379 = sand.u32 %s149, 1
          %s380 = smul.addr %s379, 128
          %s381 = scalar_lea.vmem [#allocation12], %s380
          %383 = vsyncadd %s378, 0
          %s384 = smul.addr %s31, 16
          %s385 = smul.addr %s384, 8
          %s386 = scalar_lea.hbm %s4, %s385
          %s387 = sshll.u32 %s386, 4
          %s388 = int_to_ptr.hbm [resolvable:$true] %s387
          %s389 = sshll.u32 %s381, 4
          %s390 = int_to_ptr.vmem [resolvable:$true] %s389
          %395 = dma.hbm_to_vmem [thread:$0]  %s388, 2048, %s390, %s378, 128, 128, 8
        $region48: #{tpu_custom_call.1} parent=31 // pred_fallthru
          _
      $region32: #{tpu_custom_call.1} parent=5 // pred_fallthru
        _
      %p396 = scmp.le.s32.totalorder 1, %s23
      %p397 = scmp.lt.s32.totalorder %s23, 4
      %p398 = pnand %p396, %p397
      %p399 = pneg %p398
      // Predicated region
      $region49: #{tpu_custom_call.1} parent=5 // pred_check
        _
      $region50: #{tpu_custom_call.1} parent=5 // pred_check_branch
        %401 = sbr.rel (%p398) target = $region52
      $region51: #{tpu_custom_call.1} parent=5 // pred_region
        %s402 = ssub.s32 %s23, 1
        // Predicated region
        $region53: #{tpu_custom_call.1} parent=51 // pred_check
          %p403 = pneg %p61
        $region54: #{tpu_custom_call.1} parent=51 // pred_check_branch
          %405 = sbr.rel (%p403) target = $region56
        $region55: #{tpu_custom_call.1} parent=51 // pred_region
          %407 = dma.done [#allocation5], 128
        $region56: #{tpu_custom_call.1} parent=51 // pred_fallthru
          _
        %s408 = sand.u32 %s28, 1
        %s409 = scalar_lea.sflag [#allocation8], %s408
        %s410 = sand.u32 %s74, 1
        %s411 = smul.addr %s410, 128
        %s412 = scalar_lea.vmem [#allocation7], %s411
        // Predicated region
        $region57: #{tpu_custom_call.1} parent=51 // pred_check
          %p413 = pneg %p87
        $region58: #{tpu_custom_call.1} parent=51 // pred_check_branch
          %415 = sbr.rel (%p413) target = $region60
        $region59: #{tpu_custom_call.1} parent=51 // pred_region
          %417 = dma.done %s409, 2048
        $region60: #{tpu_custom_call.1} parent=51 // pred_fallthru
          _
        %s418 = sand.u32 %s28, 1
        %s419 = scalar_lea.sflag [#allocation8], %s418
        %s420 = sand.u32 %s100, 1
        %s421 = scalar_lea.vmem [#allocation9], %s420
        // Predicated region
        $region61: #{tpu_custom_call.1} parent=51 // pred_check
          %p422 = pneg %p113
        $region62: #{tpu_custom_call.1} parent=51 // pred_check_branch
          %424 = sbr.rel (%p422) target = $region64
        $region63: #{tpu_custom_call.1} parent=51 // pred_region
          %426 = dma.done %s419, 16
        $region64: #{tpu_custom_call.1} parent=51 // pred_fallthru
          _
        %s427 = sand.u32 %s28, 1
        %s428 = scalar_lea.sflag [#allocation11], %s427
        %s429 = sand.u32 %s126, 1
        %s430 = scalar_lea.vmem [#allocation10], %s429
        // Predicated region
        $region65: #{tpu_custom_call.1} parent=51 // pred_check
          %p431 = pneg %p139
        $region66: #{tpu_custom_call.1} parent=51 // pred_check_branch
          %433 = sbr.rel (%p431) target = $region68
        $region67: #{tpu_custom_call.1} parent=51 // pred_region
          %435 = dma.done %s428, 16
        $region68: #{tpu_custom_call.1} parent=51 // pred_fallthru
          _
        %s436 = sand.u32 %s28, 1
        %s437 = scalar_lea.sflag [#allocation11], %s436
        %s438 = sand.u32 %s152, 1
        %s439 = smul.addr %s438, 128
        %s440 = scalar_lea.vmem [#allocation12], %s439
        // Predicated region
        $region69: #{tpu_custom_call.1} parent=51 // pred_check
          %p441 = pneg %p165
        $region70: #{tpu_custom_call.1} parent=51 // pred_check_branch
          %443 = sbr.rel (%p441) target = $region72
        $region71: #{tpu_custom_call.1} parent=51 // pred_region
          %445 = dma.done %s437, 2048
        $region72: #{tpu_custom_call.1} parent=51 // pred_fallthru
          _
        // Predicated region
        $region73: #{tpu_custom_call.1} parent=51 // pred_check
          %p446 = pneg %p186
        $region74: #{tpu_custom_call.1} parent=51 // pred_check_branch
          %448 = sbr.rel (%p446) target = $region76
        $region75: #{tpu_custom_call.1} parent=51 // pred_region
          %450 = dma.done [#allocation14], 2048
        $region76: #{tpu_custom_call.1} parent=51 // pred_fallthru
          _
        // Predicated region
        $region77: #{tpu_custom_call.1} parent=51 // pred_check
          %p451 = pneg %p207
        $region78: #{tpu_custom_call.1} parent=51 // pred_check_branch
          %453 = sbr.rel (%p451) target = $region80
        $region79: #{tpu_custom_call.1} parent=51 // pred_region
          %455 = dma.done [#allocation14], 2048
        $region80: #{tpu_custom_call.1} parent=51 // pred_fallthru
          _
        %p456 = pneg %p61
        %p457 = pneg %p58
        %s458 = sand.u32 %s28, 1
        %s459 = scalar_lea.sflag [#allocation8], %s458
        %s460 = sand.u32 %s74, 1
        %s461 = smul.addr %s460, 128
        %s462 = scalar_lea.vmem [#allocation7], %s461
        %p463 = pneg %p87
        %p464 = pneg %p84
        %s465 = sand.u32 %s28, 1
        %s466 = scalar_lea.sflag [#allocation8], %s465
        %s467 = sand.u32 %s100, 1
        %s468 = scalar_lea.vmem [#allocation9], %s467
        %p469 = pneg %p113
        %p470 = pneg %p110
        %s471 = sand.u32 %s28, 1
        %s472 = scalar_lea.sflag [#allocation11], %s471
        %s473 = sand.u32 %s126, 1
        %s474 = scalar_lea.vmem [#allocation10], %s473
        %p475 = pneg %p139
        %p476 = pneg %p136
        %s477 = sand.u32 %s28, 1
        %s478 = scalar_lea.sflag [#allocation11], %s477
        %s479 = sand.u32 %s152, 1
        %s480 = smul.addr %s479, 128
        %s481 = scalar_lea.vmem [#allocation12], %s480
        %p482 = pneg %p165
        %p483 = pneg %p162
        %p484 = pneg %p186
        %p485 = pneg %p183
        %p486 = pneg %p207
        %p487 = pneg %p204
        %p488 = pneg %p228
        %p489 = pneg %p225
        %p490 = pneg %p254
        %p491 = pneg %p251
        %p492 = scmp.eq.s32.totalorder %s33, 0
        // Predicated region
        $region81: #{tpu_custom_call.1} parent=51 // pred_check
          %p493 = pneg %p492
        $region82: #{tpu_custom_call.1} parent=51 // pred_check_branch
          %495 = sbr.rel (%p493) target = $region84
        $region83: #{tpu_custom_call.1} parent=51 // pred_region
          %v496 = vld [vmem:[#allocation4] sm:$0xff]
          %497 = vst [vmem:[#allocation2] sm:$0xff] %v496
          %498 = vst [vmem:[#allocation3] sm:$0xff] 0.0
        $region84: #{tpu_custom_call.1} parent=51 // pred_fallthru
          _
        %v499 = vld [vmem:[%s412] sm:$0xff]
        %v500 = vld [vmem:[%s412 + $0x8] sm:$0xff]
        %v501 = vld [vmem:[%s412 + $0x10] sm:$0xff]
        %v502 = vld [vmem:[%s412 + $0x18] sm:$0xff]
        %v503 = vld [vmem:[%s412 + $0x20] sm:$0xff]
        %v504 = vld [vmem:[%s412 + $0x28] sm:$0xff]
        %v505 = vld [vmem:[%s412 + $0x30] sm:$0xff]
        %v506 = vld [vmem:[%s412 + $0x38] sm:$0xff]
        %v507 = vld [vmem:[%s412 + $0x40] sm:$0xff]
        %v508 = vld [vmem:[%s412 + $0x48] sm:$0xff]
        %v509 = vld [vmem:[%s412 + $0x50] sm:$0xff]
        %v510 = vld [vmem:[%s412 + $0x58] sm:$0xff]
        %v511 = vld [vmem:[%s412 + $0x60] sm:$0xff]
        %v512 = vld [vmem:[%s412 + $0x68] sm:$0xff]
        %v513 = vld [vmem:[%s412 + $0x70] sm:$0xff]
        %v514 = vld [vmem:[%s412 + $0x78] sm:$0xff]
        %v515 = vld [vmem:[%s440] sm:$0xff]
        %v516 = vld [vmem:[%s440 + $0x8] sm:$0xff]
        %v517 = vld [vmem:[%s440 + $0x10] sm:$0xff]
        %v518 = vld [vmem:[%s440 + $0x18] sm:$0xff]
        %v519 = vld [vmem:[%s440 + $0x20] sm:$0xff]
        %v520 = vld [vmem:[%s440 + $0x28] sm:$0xff]
        %v521 = vld [vmem:[%s440 + $0x30] sm:$0xff]
        %v522 = vld [vmem:[%s440 + $0x38] sm:$0xff]
        %v523 = vld [vmem:[%s440 + $0x40] sm:$0xff]
        %v524 = vld [vmem:[%s440 + $0x48] sm:$0xff]
        %v525 = vld [vmem:[%s440 + $0x50] sm:$0xff]
        %v526 = vld [vmem:[%s440 + $0x58] sm:$0xff]
        %v527 = vld [vmem:[%s440 + $0x60] sm:$0xff]
        %v528 = vld [vmem:[%s440 + $0x68] sm:$0xff]
        %v529 = vld [vmem:[%s440 + $0x70] sm:$0xff]
        %v530 = vld [vmem:[%s440 + $0x78] sm:$0xff]
        %v531 = vld [vmem:[#allocation2] sm:$0xff]
        %v532 = vld [vmem:[%s421] sm:$0x1]
        %v534 = vperm.slane %v532, 0
        %536 = vmatpush.xpose.msra.mxu0 %v514
        %537 = vmatpush.xpose.msra.mxu0 %v513
        %538 = vmatpush.xpose.msra.mxu0 %v512
        %539 = vmatpush.xpose.msra.mxu0 %v511
        %540 = vmatpush.xpose.msra.mxu0 %v510
        %541 = vmatpush.xpose.msra.mxu0 %v509
        %542 = vmatpush.xpose.msra.mxu0 %v508
        %543 = vmatpush.xpose.msra.mxu0 %v507
        %544 = vmatpush.xpose.msra.mxu0 %v506
        %545 = vmatpush.xpose.msra.mxu0 %v505
        %546 = vmatpush.xpose.msra.mxu0 %v504
        %547 = vmatpush.xpose.msra.mxu0 %v503
        %548 = vmatpush.xpose.msra.mxu0 %v502
        %549 = vmatpush.xpose.msra.mxu0 %v501
        %550 = vmatpush.xpose.msra.mxu0 %v500
        %551 = vmatpush.xpose.msra.mxu0 %v499
        %552 = vmatmul.f32.gmra.mxu0 %v531
        %v553 = vpop.f32.mrf.mxu0
        %v554 = vadd.f32 %v534, %v553
        %555 = vdwg.mxu0
        %v556 = vmax.f32 %v554, 0.0
        %557 = vmatpush.msra.mxu0 %v514
        %558 = vmatpush.msra.mxu0 %v513
        %559 = vmatpush.msra.mxu0 %v512
        %560 = vmatpush.msra.mxu0 %v511
        %561 = vmatpush.msra.mxu0 %v510
        %562 = vmatpush.msra.mxu0 %v509
        %563 = vmatpush.msra.mxu0 %v508
        %564 = vmatpush.msra.mxu0 %v507
        %565 = vmatpush.msra.mxu0 %v506
        %566 = vmatpush.msra.mxu0 %v505
        %567 = vmatpush.msra.mxu0 %v504
        %568 = vmatpush.msra.mxu0 %v503
        %569 = vmatpush.msra.mxu0 %v502
        %570 = vmatpush.msra.mxu0 %v501
        %571 = vmatpush.msra.mxu0 %v500
        %572 = vmatpush.msra.mxu0 %v499
        %573 = vmatmul.f32.gmra.mxu0 %v556
        %v574 = vpop.f32.mrf.mxu0
        %v575 = vadd.f32 0.0, %v574
        %576 = vdwg.mxu0
        %v577 = vld [vmem:[#allocation3] sm:$0xff]
        %v578 = vld [vmem:[%s430] sm:$0x1]
        %v580 = vperm.slane %v578, 0
        %v582 = vmul.f32 %v575, %v580
        %v583 = vadd.f32 %v577, %v582
        %584 = vst [vmem:[#allocation3] sm:$0xff] %v583
        %585 = vmatpush.xpose.msra.mxu0 %v530
        %586 = vmatpush.xpose.msra.mxu0 %v529
        %587 = vmatpush.xpose.msra.mxu0 %v528
        %588 = vmatpush.xpose.msra.mxu0 %v527
        %589 = vmatpush.xpose.msra.mxu0 %v526
        %590 = vmatpush.xpose.msra.mxu0 %v525
        %591 = vmatpush.xpose.msra.mxu0 %v524
        %592 = vmatpush.xpose.msra.mxu0 %v523
        %593 = vmatpush.xpose.msra.mxu0 %v522
        %594 = vmatpush.xpose.msra.mxu0 %v521
        %595 = vmatpush.xpose.msra.mxu0 %v520
        %596 = vmatpush.xpose.msra.mxu0 %v519
        %597 = vmatpush.xpose.msra.mxu0 %v518
        %598 = vmatpush.xpose.msra.mxu0 %v517
        %599 = vmatpush.xpose.msra.mxu0 %v516
        %600 = vmatpush.xpose.msra.mxu0 %v515
        %601 = vmatmul.f32.gmra.mxu0 %v583
        %v602 = vpop.f32.mrf.mxu0
        %v603 = vadd.f32 0.0, %v602
        %604 = vdwg.mxu0
        %605 = vmatpush.msra.mxu0 %v530
        %606 = vmatpush.msra.mxu0 %v529
        %607 = vmatpush.msra.mxu0 %v528
        %608 = vmatpush.msra.mxu0 %v527
        %609 = vmatpush.msra.mxu0 %v526
        %610 = vmatpush.msra.mxu0 %v525
        %611 = vmatpush.msra.mxu0 %v524
        %612 = vmatpush.msra.mxu0 %v523
        %613 = vmatpush.msra.mxu0 %v522
        %614 = vmatpush.msra.mxu0 %v521
        %615 = vmatpush.msra.mxu0 %v520
        %616 = vmatpush.msra.mxu0 %v519
        %617 = vmatpush.msra.mxu0 %v518
        %618 = vmatpush.msra.mxu0 %v517
        %619 = vmatpush.msra.mxu0 %v516
        %620 = vmatpush.msra.mxu0 %v515
        %621 = vmatmul.f32.gmra.mxu0 %v603
        %v622 = vpop.f32.mrf.mxu0
        %v623 = vadd.f32 0.0, %v622
        %624 = vdwg.mxu0
        %v625 = vadd.f32 %v531, %v623
        %626 = vst [vmem:[#allocation2] sm:$0xff] %v625
        %p627 = scmp.eq.s32.totalorder %s33, 2
        // Predicated region
        $region85: #{tpu_custom_call.1} parent=51 // pred_check
          %p628 = pneg %p627
        $region86: #{tpu_custom_call.1} parent=51 // pred_check_branch
          %630 = sbr.rel (%p628) target = $region88
        $region87: #{tpu_custom_call.1} parent=51 // pred_region
          %v631 = vld [vmem:[#allocation13] sm:$0xff]
          %v632 = vld [vmem:[#allocation13 + $0x8] sm:$0xff]
          %v633 = vld [vmem:[#allocation13 + $0x10] sm:$0xff]
          %v634 = vld [vmem:[#allocation13 + $0x18] sm:$0xff]
          %v635 = vld [vmem:[#allocation13 + $0x20] sm:$0xff]
          %v636 = vld [vmem:[#allocation13 + $0x28] sm:$0xff]
          %v637 = vld [vmem:[#allocation13 + $0x30] sm:$0xff]
          %v638 = vld [vmem:[#allocation13 + $0x38] sm:$0xff]
          %v639 = vld [vmem:[#allocation13 + $0x40] sm:$0xff]
          %v640 = vld [vmem:[#allocation13 + $0x48] sm:$0xff]
          %v641 = vld [vmem:[#allocation13 + $0x50] sm:$0xff]
          %v642 = vld [vmem:[#allocation13 + $0x58] sm:$0xff]
          %v643 = vld [vmem:[#allocation13 + $0x60] sm:$0xff]
          %v644 = vld [vmem:[#allocation13 + $0x68] sm:$0xff]
          %v645 = vld [vmem:[#allocation13 + $0x70] sm:$0xff]
          %v646 = vld [vmem:[#allocation13 + $0x78] sm:$0xff]
          %v647 = vld [vmem:[#allocation15] sm:$0xff]
          %v648 = vld [vmem:[#allocation15 + $0x8] sm:$0xff]
          %v649 = vld [vmem:[#allocation15 + $0x10] sm:$0xff]
          %v650 = vld [vmem:[#allocation15 + $0x18] sm:$0xff]
          %v651 = vld [vmem:[#allocation15 + $0x20] sm:$0xff]
          %v652 = vld [vmem:[#allocation15 + $0x28] sm:$0xff]
          %v653 = vld [vmem:[#allocation15 + $0x30] sm:$0xff]
          %v654 = vld [vmem:[#allocation15 + $0x38] sm:$0xff]
          %v655 = vld [vmem:[#allocation15 + $0x40] sm:$0xff]
          %v656 = vld [vmem:[#allocation15 + $0x48] sm:$0xff]
          %v657 = vld [vmem:[#allocation15 + $0x50] sm:$0xff]
          %v658 = vld [vmem:[#allocation15 + $0x58] sm:$0xff]
          %v659 = vld [vmem:[#allocation15 + $0x60] sm:$0xff]
          %v660 = vld [vmem:[#allocation15 + $0x68] sm:$0xff]
          %v661 = vld [vmem:[#allocation15 + $0x70] sm:$0xff]
          %v662 = vld [vmem:[#allocation15 + $0x78] sm:$0xff]
          %663 = vmatpush.msra.mxu0 %v662
          %664 = vmatpush.msra.mxu0 %v661
          %665 = vmatpush.msra.mxu0 %v660
          %666 = vmatpush.msra.mxu0 %v659
          %667 = vmatpush.msra.mxu0 %v658
          %668 = vmatpush.msra.mxu0 %v657
          %669 = vmatpush.msra.mxu0 %v656
          %670 = vmatpush.msra.mxu0 %v655
          %671 = vmatpush.msra.mxu0 %v654
          %672 = vmatpush.msra.mxu0 %v653
          %673 = vmatpush.msra.mxu0 %v652
          %674 = vmatpush.msra.mxu0 %v651
          %675 = vmatpush.msra.mxu0 %v650
          %676 = vmatpush.msra.mxu0 %v649
          %677 = vmatpush.msra.mxu0 %v648
          %678 = vmatpush.msra.mxu0 %v647
          %679 = vmatmul.f32.gmra.mxu0 %v583
          %v680 = vpop.f32.mrf.mxu0
          %v681 = vadd.f32 0.0, %v680
          %682 = vdwg.mxu0
          %683 = vmatpush.msra.mxu0 %v646
          %684 = vmatpush.msra.mxu0 %v645
          %685 = vmatpush.msra.mxu0 %v644
          %686 = vmatpush.msra.mxu0 %v643
          %687 = vmatpush.msra.mxu0 %v642
          %688 = vmatpush.msra.mxu0 %v641
          %689 = vmatpush.msra.mxu0 %v640
          %690 = vmatpush.msra.mxu0 %v639
          %691 = vmatpush.msra.mxu0 %v638
          %692 = vmatpush.msra.mxu0 %v637
          %693 = vmatpush.msra.mxu0 %v636
          %694 = vmatpush.msra.mxu0 %v635
          %695 = vmatpush.msra.mxu0 %v634
          %696 = vmatpush.msra.mxu0 %v633
          %697 = vmatpush.msra.mxu0 %v632
          %698 = vmatpush.msra.mxu0 %v631
          %699 = vmatmul.f32.gmra.mxu0 %v625
          %v700 = vpop.f32.mrf.mxu0
          %v701 = vadd.f32 %v681, %v700
          %702 = vdwg.mxu0
          %v703 = vld [vmem:[%s7] sm:$0x1]
          %v705 = vperm.slane %v703, 0
          %v707 = vadd.f32 %v701, %v705
          %708 = vst [vmem:[#allocation16] sm:$0xff] %v707
        $region88: #{tpu_custom_call.1} parent=51 // pred_fallthru
          _
        // Predicated region
        $region89: #{tpu_custom_call.1} parent=51 // pred_check
          %p709 = pneg %p251
        $region90: #{tpu_custom_call.1} parent=51 // pred_check_branch
          %711 = sbr.rel (%p709) target = $region92
        $region91: #{tpu_custom_call.1} parent=51 // pred_region
          %713 = vsyncadd [#allocation6], 0
          %s714 = smul.addr %s32, 8
          %s715 = scalar_lea.hbm %s8, %s714
          %s717 = sshll.u32 [#allocation16], 4
          %s718 = int_to_ptr.vmem [resolvable:$true] %s717
          %s719 = sshll.u32 %s715, 4
          %s720 = int_to_ptr.hbm [resolvable:$true] %s719
          %722 = dma.vmem_to_hbm [thread:$0]  %s718, 128, %s720, [#allocation6]
        $region92: #{tpu_custom_call.1} parent=51 // pred_fallthru
          _
        // Predicated region
        $region93: #{tpu_custom_call.1} parent=51 // pred_check
          %p723 = pneg %p251
        $region94: #{tpu_custom_call.1} parent=51 // pred_check_branch
          %725 = sbr.rel (%p723) target = $region96
        $region95: #{tpu_custom_call.1} parent=51 // pred_region
          %727 = dma.done [#allocation6], 128
        $region96: #{tpu_custom_call.1} parent=51 // pred_fallthru
          _
      $region52: #{tpu_custom_call.1} parent=5 // pred_fallthru
        _
      %p728 = scmp.le.s32.totalorder 2, %s23
      // Predicated region
      $region97: #{tpu_custom_call.1} parent=5 // pred_check
        %p729 = pneg %p728
      $region98: #{tpu_custom_call.1} parent=5 // pred_check_branch
        %731 = sbr.rel (%p729) target = $region100
      $region99: #{tpu_custom_call.1} parent=5 // pred_region
        %s732 = ssub.s32 %s23, 2
      $region100: #{tpu_custom_call.1} parent=5 // pred_fallthru
        _
    $region6: #{tpu_custom_call.1} parent=1 // loop_footer
      %s27 = sadd.s32 1, %s23
    $region7: #{tpu_custom_call.1} parent=1 // loop_footer_branch
      %22 = sbr.rel target = $region3
    $region8: #{tpu_custom_call.1} parent=1 // loop_exit
      _
    %733 = vsyncpa [#allocation5], 1
    %s734 = scalar_lea.sflag [#allocation5], 1
    %735 = vsyncpa %s734, 1
    %736 = vsyncpa [#allocation8], 1
    %s737 = scalar_lea.sflag [#allocation8], 1
    %738 = vsyncpa %s737, 1
    %739 = vsyncpa [#allocation11], 1
    %s740 = scalar_lea.sflag [#allocation11], 1
    %741 = vsyncpa %s740, 1
    %742 = vsyncpa [#allocation14], 1
    %743 = vsyncpa [#allocation6], 1
    %s744 = scalar_lea.sflag [#allocation6], 1
    %745 = vsyncpa %s744, 1

</llo_original>
